<compile_context>
chip_gen: v7x
topology: tpu7x:2x2x1
jax: 0.10.0
libtpu: 0.0.40
codegen_flags: <defaults>
</compile_context>

<pallas_src>
import jax
import jax.numpy as jnp
from jax.experimental import pallas as pl
from jax.experimental.pallas import tpu as pltpu


def _round_up(x, m):
    return (x + m - 1) // m * m


def _vmem_info(frac=0.35, fallback_bytes=64 * 1024 * 1024):
    """Generation-aware (vmem_budget, physical_vmem) in bytes."""
    phys = fallback_bytes
    try:
        info = pltpu.get_tpu_info()
        for name in ("vmem_capacity_bytes", "vmem_size_bytes", "vmem_bytes"):
            cap = getattr(info, name, None)
            if cap:
                phys = int(cap)
                break
    except Exception:
        pass  # conservative fallback (safe even on v7x's 64 MiB per TC)
    return int(phys * frac), phys


def _patch_embed_kernel(p_ref, w_ref, b_ref, o_ref):
    # p_ref: (tm, K), w_ref: (K, tn) compute dtype; b_ref: (1, tn) f32;
    # o_ref: (tm, tn). Single MXU pass, f32 accumulation, f32 bias add.
    acc = jnp.dot(p_ref[...], w_ref[...], preferred_element_type=jnp.float32)
    o_ref[...] = (acc + b_ref[...]).astype(o_ref.dtype)


def patch_embed_forward(x, weight, bias, patch_size, *,
                        out_dtype=None, compute_dtype=jnp.bfloat16,
                        tm_max=1024, tn_max=None):
    """3D PatchEmbed forward.

    x:      (B, C, X, Y, Z)    channels-first activations (as in the module)
    weight: (E, C, pX, pY, pZ) Conv3d weight
    bias:   (E,)
    Returns (B, num_patches, E), patches in (gx, gy, gz) row-major order.
    """
    B, C, X, Y, Z = x.shape
    E = weight.shape[0]
    pX, pY, pZ = patch_size
    assert X % pX == 0 and Y % pY == 0 and Z % pZ == 0
    Gx, Gy, Gz = X // pX, Y // pY, Z // pZ
    N = Gx * Gy * Gz
    K = C * pX * pY * pZ
    M = B * N

    out_dtype = jnp.dtype(out_dtype if out_dtype is not None else x.dtype)
    out_bytes = out_dtype.itemsize
    cd_bytes = jnp.dtype(compute_dtype).itemsize

    vmem_budget, phys_vmem = _vmem_info()

    # ---- E (output-lane) tile: bounds the resident weight block so big K*E
    #      never blows v7x's 64 MiB VMEM; a no-op (one tile) for small E.
    tn = _round_up(E, 128)
    if tn_max is not None:
        tn = max(128, min(tn, _round_up(tn_max, 128)))
    while K * tn * cd_bytes > vmem_budget // 3 and tn > 128:
        tn = max(128, _round_up(tn // 2, 128))
    Ep = _round_up(E, tn)          # padded so Ep is a whole number of tn tiles
    n_j = Ep // tn
    w_bufs = 1 if n_j == 1 else 2  # resident weight: single-buffer; tiled: double

    # ---- M (row) tile: as big as the VMEM budget allows.
    fixed_bytes = w_bufs * (K * tn * cd_bytes + tn * 4)              # weight + bias
    per_row_bytes = 2 * K * cd_bytes + 2 * tn * out_bytes + tn * 4   # patch/out 2-buf + f32 acc
    tm_budget = max(vmem_budget - fixed_bytes, per_row_bytes) // per_row_bytes

    align = 128 if M >= 256 else 8   # 128-row alignment when the budget derates tm (v5e MXU)
    tm = max(align, min(int(tm_max), int(tm_budget)))
    tm = (tm // align) * align
    tm = min(tm, _round_up(M, align))
    # v7x megacore: make sure the grid has >= 2 steps whenever M allows it.
    while tm > align and (M + tm - 1) // tm < 2:
        tm = max(align, ((tm // 2) // align) * align)
    Mp = _round_up(M, tm)
    n_i = Mp // tm

    # ---- glue: extract non-overlapping patches, flattened (c, kx, ky, kz).
    # Cast to the compute dtype BEFORE the relayout so the transpose moves half
    # the bytes; only the row axis is padded (K stays un-padded: full-K blocks).
    xb = x.astype(compute_dtype)
    patches = xb.reshape(B, C, Gx, pX, Gy, pY, Gz, pZ)
    patches = patches.transpose(0, 2, 4, 6, 1, 3, 5, 7)      # (B,Gx,Gy,Gz,C,pX,pY,pZ)
    patches = patches.reshape(M, K)
    patches = jnp.pad(patches, ((0, Mp - M), (0, 0)))

    w_mat = weight.astype(compute_dtype).reshape(E, K).T     # (K, E), small one-time
    w_mat = jnp.pad(w_mat, ((0, 0), (0, Ep - E)))
    b_mat = jnp.pad(bias.astype(jnp.float32), (0, Ep - E)).reshape(1, Ep)

    # ---- VMEM limit: cover the estimate (incl. f32 accumulator), leave Mosaic
    #      headroom below physical VMEM (matters most on v7x's 64 MiB).
    vmem_est = fixed_bytes + tm * per_row_bytes
    vmem_limit = int(min(max(2 * vmem_est, 32 * 1024 * 1024), int(phys_vmem * 0.8)))
    vmem_limit = int(max(vmem_limit, vmem_est))

    if n_j == 1:
        # Weight/bias never change across the grid: single-buffer them so their
        # VMEM footprint is not doubled.
        w_spec = pl.BlockSpec((K, tn), lambda j, i: (0, j), pipeline_mode=pl.Buffered(1))
        b_spec = pl.BlockSpec((1, tn), lambda j, i: (0, j), pipeline_mode=pl.Buffered(1))
    else:
        # E-tiled: weight block changes n_j times (outer axis); default double
        # buffering hides the refetch.
        w_spec = pl.BlockSpec((K, tn), lambda j, i: (0, j))
        b_spec = pl.BlockSpec((1, tn), lambda j, i: (0, j))

    out = pl.pallas_call(
        _patch_embed_kernel,
        out_shape=jax.ShapeDtypeStruct((Mp, Ep), out_dtype),
        grid_spec=pltpu.PrefetchScalarGridSpec(
            num_scalar_prefetch=0,
            # E tiles outer so the (K, tn) weight block stays resident across
            # the whole inner M sweep; each (j, i) writes a disjoint out tile.
            grid=(n_j, n_i),
            in_specs=[
                # NOTE: if xprof shows exposed patch-tile DMA at many grid
                # steps, bump this (and out_specs) to pl.Buffered(3).
                pl.BlockSpec((tm, K), lambda j, i: (i, 0)),
                w_spec,
                b_spec,
            ],
            out_specs=pl.BlockSpec((tm, tn), lambda j, i: (i, j)),
        ),
        compiler_params=pltpu.CompilerParams(
            # Both axes are independent output tiles: lets v7x shard the grid
            # across its 2 TensorCores.
            dimension_semantics=("parallel", "parallel"),
            vmem_limit_bytes=vmem_limit,
        ),
    )(patches, w_mat, b_mat)

    return out[:M, :E].reshape(B, N, E)


def _conv_reference(x, weight, bias, patch_size):
    """Independent reference: the strided Conv3d exactly as PyTorch runs it."""
    ref = jax.lax.conv_general_dilated(
        x, weight, window_strides=patch_size, padding="VALID",
        dimension_numbers=("NCDHW", "OIDHW", "NCDHW"))
    B = x.shape[0]
    E = weight.shape[0]
    N = ref.shape[2] * ref.shape[3] * ref.shape[4]
    return ref.reshape(B, E, N).transpose(0, 2, 1) + bias


if __name__ == "__main__":
    key = jax.random.PRNGKey(0)

    # --- Test 1: module-like small shapes. img=(12,12,12), patch=4, C=3, E=32
    #     -> grid (3,3,3), N=27, K=192, M=54. Exercises ragged M + multi-step
    #     M grid (tm auto-shrinks for a >=2-step grid) + un-padded K blocks.
    B, C = 2, 3
    img_size = (12, 12, 12)
    patch_size = (4, 4, 4)
    embed_dim = 32
    kx, kw, kb, key = jax.random.split(key, 4)
    x = jax.random.normal(kx, (B, C) + img_size, dtype=jnp.float32)
    weight = jax.random.normal(kw, (embed_dim, C) + patch_size, dtype=jnp.float32) * 0.02
    bias = jax.random.normal(kb, (embed_dim,), dtype=jnp.float32) * 0.02

    out = patch_embed_forward(x, weight, bias, patch_size)
    out = jax.block_until_ready(out)
    ref = _conv_reference(x, weight, bias, patch_size)
    N = (img_size[0] // patch_size[0]) * (img_size[1] // patch_size[1]) * (img_size[2] // patch_size[2])
    assert out.shape == (B, N, embed_dim), out.shape
    # bf16 operands / f32 accumulation -> bf16-level tolerance vs. the f32 conv ref.
    assert jnp.allclose(out, ref, atol=2e-2, rtol=2e-2), float(jnp.max(jnp.abs(out - ref)))

    # --- Test 2: exercises the 2-D (E-tiled) grid path and bf16 output.
    #     img=(8,8,8), patch=2, C=4, E=256, tn_max=128 -> grid (2, 2).
    B2, C2 = 2, 4
    img_size2 = (8, 8, 8)
    patch_size2 = (2, 2, 2)
    embed_dim2 = 256
    kx, kw, kb, key = jax.random.split(key, 4)
    x2 = jax.random.normal(kx, (B2, C2) + img_size2, dtype=jnp.float32)
    weight2 = jax.random.normal(kw, (embed_dim2, C2) + patch_size2, dtype=jnp.float32) * 0.02
    bias2 = jax.random.normal(kb, (embed_dim2,), dtype=jnp.float32) * 0.02

    out2 = patch_embed_forward(x2, weight2, bias2, patch_size2,
                               out_dtype=jnp.bfloat16, tn_max=128)
    out2 = jax.block_until_ready(out2)
    ref2 = _conv_reference(x2, weight2, bias2, patch_size2)
    N2 = (img_size2[0] // patch_size2[0]) ** 3
    assert out2.shape == (B2, N2, embed_dim2), out2.shape
    assert jnp.allclose(out2.astype(jnp.float32), ref2, atol=2e-2, rtol=2e-2), \
        float(jnp.max(jnp.abs(out2.astype(jnp.float32) - ref2)))

    print("KERNEL_OK")
</pallas_src>

<mosaic_0001>
module attributes {stable_mosaic.version = 11 : i64} {
  func.func @_patch_embed_kernel(%arg0: i32, %arg1: i32, %arg2: memref<24x192xbf16, #tpu.memory_space<vmem>>, %arg3: memref<192x128xbf16, #tpu.memory_space<vmem>>, %arg4: memref<1x128xf32, #tpu.memory_space<vmem>>, %arg5: memref<24x128xf32, #tpu.memory_space<vmem>>) attributes {dimension_semantics = [#tpu.dimension_semantics<parallel>, #tpu.dimension_semantics<parallel>], iteration_bounds = array<i64: 1, 3>, scalar_prefetch = 0 : i64, scratch_operands = 0 : i64, tpu.core_type = #tpu.core_type<tc>, window_params = [{transform_indices = @transform_0, window_bounds = array<i64: 24, 192>}, {pipeline_mode = #tpu.pipeline_mode<synchronous>, transform_indices = @transform_1, window_bounds = array<i64: 192, 128>}, {pipeline_mode = #tpu.pipeline_mode<synchronous>, transform_indices = @transform_2, window_bounds = array<i64: 1, 128>}, {transform_indices = @transform_3, window_bounds = array<i64: 24, 128>}]} {
    %c0 = arith.constant 0 : index
    %c0_0 = arith.constant 0 : index
    %0 = vector.load %arg2[%c0, %c0_0] : memref<24x192xbf16, #tpu.memory_space<vmem>>, vector<24x192xbf16>
    %c0_1 = arith.constant 0 : index
    %c0_2 = arith.constant 0 : index
    %1 = vector.load %arg3[%c0_1, %c0_2] : memref<192x128xbf16, #tpu.memory_space<vmem>>, vector<192x128xbf16>
    %cst = arith.constant dense<0.000000e+00> : vector<24x128xf32>
    %2 = tpu.matmul %0, %1, %cst {dimension_numbers = #tpu.dot_dimension_numbers<[1], [0], [0], [1], [0, 0, 1, 1], [], []>} : vector<24x192xbf16>, vector<192x128xbf16>, vector<24x128xf32> -> vector<24x128xf32>
    %c0_3 = arith.constant 0 : index
    %c0_4 = arith.constant 0 : index
    %3 = vector.load %arg4[%c0_3, %c0_4] : memref<1x128xf32, #tpu.memory_space<vmem>>, vector<1x128xf32>
    %4 = vector.broadcast %3 : vector<1x128xf32> to vector<24x128xf32>
    %5 = arith.addf %2, %4 : vector<24x128xf32>
    %c0_5 = arith.constant 0 : index
    %c0_6 = arith.constant 0 : index
    %6 = vector.load %arg5[%c0_5, %c0_6] : memref<24x128xf32, #tpu.memory_space<vmem>>, vector<24x128xf32>
    tpu.vector_store %arg5[%c0_5, %c0_6], %5 {strides = array<i32>} : memref<24x128xf32, #tpu.memory_space<vmem>>, vector<24x128xf32>,
    return
  }
  func.func @transform_0(%arg0: i32, %arg1: i32) -> (i32, i32) {
    %c0_i32 = arith.constant 0 : i32
    %c0_i32_0 = arith.constant 0 : i32
    return %arg1, %c0_i32 : i32, i32
  }
  func.func @transform_1(%arg0: i32, %arg1: i32) -> (i32, i32) {
    %c0_i32 = arith.constant 0 : i32
    %c0_i32_0 = arith.constant 0 : i32
    return %c0_i32, %arg0 : i32, i32
  }
  func.func @transform_2(%arg0: i32, %arg1: i32) -> (i32, i32) {
    %c0_i32 = arith.constant 0 : i32
    %c0_i32_0 = arith.constant 0 : i32
    return %c0_i32, %arg0 : i32, i32
  }
  func.func @transform_3(%arg0: i32, %arg1: i32) -> (i32, i32) {
    %c0_i32 = arith.constant 0 : i32
    return %arg1, %arg0 : i32, i32
  }
}

</mosaic_0001>

<llo_original>
// kernel: tpu_custom_call.1
$region0: #{tpu_custom_call.1}
  #allocation0 [shape = 'u32[]', space=smem, size = 0x4, offset = 0x4, fixed_abs, tag = 'smem constant byte address 0x4 - core index']
  #allocation1 [shape = 'u32[144,128]{1,0:T(1,128)}', space=vmem, size = 0x12000, scoped, tag = 'internal scratch']
  %s0 = inlined_call_operand.hbm [shape: bf16[72,192], index: 0, kind: input, shape index: {}]
  %s1 = inlined_call_operand.hbm [shape: bf16[192,128], index: 1, kind: input, shape index: {}]
  %s2 = inlined_call_operand.vmem [shape: f32[1,128], index: 2, kind: input, shape index: {}]
  %s3 = inlined_call_operand.hbm [shape: f32[72,128], index: 3, kind: output, shape index: {}]
  %s4 = sld [smem:[#allocation0]]
  $region53: #{tpu_custom_call.1} parent=0
    _
  %s6 = ssub.s32 1, %s4
  %s7 = scalar_select 0, %s6, %s4
  $region1: #{tpu_custom_call.1} parent=0
    #allocation2 [shape = 'u8[24576]{0}', space=vmem, size = 0x6000, scoped, tag = 'input window, operand 0']
    #allocation3 [shape = 's32[2]{0}', space=sflag, size = 0x8, scoped, tag = 'scoped memory for tpu_custom_call.1']
    #allocation4 [shape = 's32[2]{0}', space=sflag, size = 0x8, scoped, tag = 'scoped memory for tpu_custom_call.1']
    #allocation5 [shape = 'u8[49152]{0}', space=vmem, size = 0xc000, scoped, tag = 'input window, operand 1, single buffered']
    #allocation6 [shape = 's32[1]{0}', space=sflag, size = 0x4, scoped, tag = 'scoped memory for tpu_custom_call.1']
    #allocation7 [shape = 'u8[24576]{0}', space=vmem, size = 0x6000, scoped, tag = 'output window, operand 0']
    %8 = vsyncpa [#allocation3], 0
    %s9 = scalar_lea.sflag [#allocation3], 1
    %10 = vsyncpa %s9, 0
    %11 = vsyncpa [#allocation6], 0
    %12 = vsyncpa [#allocation4], 0
    %s13 = scalar_lea.sflag [#allocation4], 1
    %14 = vsyncpa %s13, 0
    loop: start=0, step=1, limit=5
    $region2: #{tpu_custom_call.1} parent=1 // loop_pre_header
      _
    $region3: #{tpu_custom_call.1} parent=1 // loop_header
      %s16 = sphi 0, %s20
      %p17 = scmp.ge.s32.totalorder %s16, 5
      %s23 = sphi 0, %s35
      %s24 = sphi 0, %s31
      %s25 = sphi 0, %s23
      %s26 = sphi 0, %s24
      %s27 = sphi 0, %s25
      %s28 = sphi 0, %s26
      %s38 = sphi 0, %s40
      %s41 = sphi 0, %s38
      %s42 = sphi 0, %s41
      %s58 = sphi 0, %s42
      %s64 = sphi 0, %s66
      %s67 = sphi 0, %s64
      %s68 = sphi 0, %s67
      %s84 = sphi 0, %s68
      %s90 = sphi 0, %s92
      %s93 = sphi 0, %s90
      %s94 = sphi 0, %s93
      %s110 = sphi 0, %s94
      %s118 = sphi 0, %s120
      %s121 = sphi 0, %s118
      %s122 = sphi 0, %s121
      %s138 = sphi 0, %s122
    $region4: #{tpu_custom_call.1} parent=1 // loop_header_branch
      %19 = sbr.rel (%p17) target = $region8
    $region5: #{tpu_custom_call.1} parent=1 // loop_body
      %s21 = ssub.s32 %s16, 1
      %s22 = ssub.s32 %s16, 2
      %s29 = sadd.s32 1, %s24
      %p30 = scmp.ge.s32.totalorder %s29, 3
      %s31 = scalar_select %p30, 0, %s29
      %s32 = sadd.s32 1, %s23
      %s33 = scalar_select %p30, %s32, %s23
      %p34 = scmp.ge.s32.totalorder %s33, 1
      %s35 = scalar_select %p34, 0, %s33
      %s36 = ssub.s32 %s24, %s31
      %p37 = scmp.eq.s32.totalorder %s36, 0
      %s39 = sadd.s32 %s38, 1
      %s40 = scalar_select %p37, %s38, %s39
      %p43 = pneg %p37
      %p44 = scmp.eq.s32.totalorder %s16, 2
      %p45 = por %p43, %p44
      %p46 = scmp.ne.s32.totalorder %s38, %s41
      %p47 = scmp.eq.s32.totalorder %s16, 0
      %p48 = por %p46, %p47
      %p49 = scmp.ne.s32.totalorder %s38, %s41
      %p50 = scmp.eq.s32.totalorder %s21, 2
      %p51 = por %p49, %p50
      %p52 = scmp.ne.s32.totalorder %s41, %s42
      %p53 = scmp.eq.s32.totalorder %s21, 0
      %p54 = por %p52, %p53
      %p55 = scmp.ne.s32.totalorder %s41, %s42
      %p56 = scmp.eq.s32.totalorder %s22, 2
      %p57 = por %p55, %p56
      %p59 = scmp.ne.s32.totalorder %s42, %s58
      %p60 = scmp.eq.s32.totalorder %s22, 0
      %p61 = por %p59, %p60
      %s62 = ssub.s32 %s23, %s35
      %p63 = scmp.eq.s32.totalorder %s62, 0
      %s65 = sadd.s32 %s64, 1
      %s66 = scalar_select %p63, %s64, %s65
      %p69 = pneg %p63
      %p70 = scmp.eq.s32.totalorder %s16, 2
      %p71 = por %p69, %p70
      %p72 = scmp.ne.s32.totalorder %s64, %s67
      %p73 = scmp.eq.s32.totalorder %s16, 0
      %p74 = por %p72, %p73
      %p75 = scmp.ne.s32.totalorder %s64, %s67
      %p76 = scmp.eq.s32.totalorder %s21, 2
      %p77 = por %p75, %p76
      %p78 = scmp.ne.s32.totalorder %s67, %s68
      %p79 = scmp.eq.s32.totalorder %s21, 0
      %p80 = por %p78, %p79
      %p81 = scmp.ne.s32.totalorder %s67, %s68
      %p82 = scmp.eq.s32.totalorder %s22, 2
      %p83 = por %p81, %p82
      %p85 = scmp.ne.s32.totalorder %s68, %s84
      %p86 = scmp.eq.s32.totalorder %s22, 0
      %p87 = por %p85, %p86
      %s88 = ssub.s32 %s23, %s35
      %p89 = scmp.eq.s32.totalorder %s88, 0
      %s91 = sadd.s32 %s90, 1
      %s92 = scalar_select %p89, %s90, %s91
      %p95 = pneg %p89
      %p96 = scmp.eq.s32.totalorder %s16, 2
      %p97 = por %p95, %p96
      %p98 = scmp.ne.s32.totalorder %s90, %s93
      %p99 = scmp.eq.s32.totalorder %s16, 0
      %p100 = por %p98, %p99
      %p101 = scmp.ne.s32.totalorder %s90, %s93
      %p102 = scmp.eq.s32.totalorder %s21, 2
      %p103 = por %p101, %p102
      %p104 = scmp.ne.s32.totalorder %s93, %s94
      %p105 = scmp.eq.s32.totalorder %s21, 0
      %p106 = por %p104, %p105
      %p107 = scmp.ne.s32.totalorder %s93, %s94
      %p108 = scmp.eq.s32.totalorder %s22, 2
      %p109 = por %p107, %p108
      %p111 = scmp.ne.s32.totalorder %s94, %s110
      %p112 = scmp.eq.s32.totalorder %s22, 0
      %p113 = por %p111, %p112
      %s114 = ssub.s32 %s24, %s31
      %s115 = ssub.s32 %s23, %s35
      %s116 = sor.u32 %s114, %s115
      %p117 = scmp.eq.s32.totalorder %s116, 0
      %s119 = sadd.s32 %s118, 1
      %s120 = scalar_select %p117, %s118, %s119
      %p123 = pneg %p117
      %p124 = scmp.eq.s32.totalorder %s16, 2
      %p125 = por %p123, %p124
      %p126 = scmp.ne.s32.totalorder %s118, %s121
      %p127 = scmp.eq.s32.totalorder %s16, 0
      %p128 = por %p126, %p127
      %p129 = scmp.ne.s32.totalorder %s118, %s121
      %p130 = scmp.eq.s32.totalorder %s21, 2
      %p131 = por %p129, %p130
      %p132 = scmp.ne.s32.totalorder %s121, %s122
      %p133 = scmp.eq.s32.totalorder %s21, 0
      %p134 = por %p132, %p133
      %p135 = scmp.ne.s32.totalorder %s121, %s122
      %p136 = scmp.eq.s32.totalorder %s22, 2
      %p137 = por %p135, %p136
      %p139 = scmp.ne.s32.totalorder %s122, %s138
      %p140 = scmp.eq.s32.totalorder %s22, 0
      %p141 = por %p139, %p140
      %p142 = scmp.le.s32.totalorder 1, %s16
      %p143 = scmp.lt.s32.totalorder %s16, 4
      %p144 = pnand %p142, %p143
      %p145 = pneg %p144
      // Predicated region
      $region9: #{tpu_custom_call.1} parent=5 // pred_check
        _
      $region10: #{tpu_custom_call.1} parent=5 // pred_check_branch
        %147 = sbr.rel (%p144) target = $region12
      $region11: #{tpu_custom_call.1} parent=5 // pred_region
        %s148 = ssub.s32 %s16, 1
        // Predicated region
        $region13: #{tpu_custom_call.1} parent=11 // pred_check
          %p149 = pneg %p80
        $region14: #{tpu_custom_call.1} parent=11 // pred_check_branch
          %151 = sbr.rel (%p149) target = $region16
        $region15: #{tpu_custom_call.1} parent=11 // pred_region
          %s153 = ssub.s32 1536, 1536
          %154 = vsyncadd [#allocation6], %s153
          %s155 = smul.addr %s25, 64
          %s156 = scalar_lea.hbm %s1, %s155
          %s157 = sshll.u32 [#allocation5], 4
          %s158 = int_to_ptr.vmem [resolvable:$true] %s157
          %163 = dma.hbm_to_vmem [thread:$0]  %s156, 1536, %s158, [#allocation6], 64, 64, 4
        $region16: #{tpu_custom_call.1} parent=11 // pred_fallthru
          _
        // Predicated region
        $region17: #{tpu_custom_call.1} parent=11 // pred_check
          %p164 = pneg %p106
        $region18: #{tpu_custom_call.1} parent=11 // pred_check_branch
          %166 = sbr.rel (%p164) target = $region20
        $region19: #{tpu_custom_call.1} parent=11 // pred_region
          %p167 = scmp.lt.s32.totalorder %s25, 0
          %s168 = scalar_select %p167, %s25, 0
          %s169 = scalar_lea.vmem %s2, %s168
        $region20: #{tpu_custom_call.1} parent=11 // pred_fallthru
          _
      $region12: #{tpu_custom_call.1} parent=5 // pred_fallthru
        _
      %p170 = scmp.lt.s32.totalorder %s16, 3
      // Predicated region
      $region21: #{tpu_custom_call.1} parent=5 // pred_check
        %p171 = pneg %p170
      $region22: #{tpu_custom_call.1} parent=5 // pred_check_branch
        %173 = sbr.rel (%p171) target = $region24
      $region23: #{tpu_custom_call.1} parent=5 // pred_region
        // Predicated region
        $region25: #{tpu_custom_call.1} parent=23 // pred_check
          %p174 = pneg %p48
        $region26: #{tpu_custom_call.1} parent=23 // pred_check_branch
          %176 = sbr.rel (%p174) target = $region28
        $region27: #{tpu_custom_call.1} parent=23 // pred_region
          %s177 = sand.u32 %s38, 1
          %s178 = scalar_lea.sflag [#allocation3], %s177
          %s179 = sand.u32 %s38, 1
          %s180 = smul.addr %s179, 24
          %s181 = scalar_lea.vmem [#allocation2], %s180
          %s182 = smul.u32 3, %s24
          %s184 = ssub.s32 384, 384
          %185 = vsyncadd %s178, %s184
          %s186 = smul.addr %s182, 2
          %s187 = smul.addr %s186, 64
          %s188 = scalar_lea.hbm %s0, %s187
          %s189 = sshll.u32 %s181, 4
          %s190 = int_to_ptr.vmem [resolvable:$true] %s189
          %195 = dma.hbm_to_vmem [thread:$0]  %s188, 384, %s190, %s178, 128, 128, 8
        $region28: #{tpu_custom_call.1} parent=23 // pred_fallthru
          _
      $region24: #{tpu_custom_call.1} parent=5 // pred_fallthru
        _
      %p196 = scmp.le.s32.totalorder 1, %s16
      %p197 = scmp.lt.s32.totalorder %s16, 4
      %p198 = pnand %p196, %p197
      %p199 = pneg %p198
      // Predicated region
      $region29: #{tpu_custom_call.1} parent=5 // pred_check
        _
      $region30: #{tpu_custom_call.1} parent=5 // pred_check_branch
        %201 = sbr.rel (%p198) target = $region32
      $region31: #{tpu_custom_call.1} parent=5 // pred_region
        %s202 = ssub.s32 %s16, 1
        %s203 = sand.u32 %s41, 1
        %s204 = scalar_lea.sflag [#allocation3], %s203
        %s205 = sand.u32 %s41, 1
        %s206 = smul.addr %s205, 24
        %s207 = scalar_lea.vmem [#allocation2], %s206
        // Predicated region
        $region33: #{tpu_custom_call.1} parent=31 // pred_check
          %p208 = pneg %p54
        $region34: #{tpu_custom_call.1} parent=31 // pred_check_branch
          %210 = sbr.rel (%p208) target = $region36
        $region35: #{tpu_custom_call.1} parent=31 // pred_region
          %211 = dma.done %s204, 384
        $region36: #{tpu_custom_call.1} parent=31 // pred_fallthru
          _
        // Predicated region
        $region37: #{tpu_custom_call.1} parent=31 // pred_check
          %p212 = pneg %p80
        $region38: #{tpu_custom_call.1} parent=31 // pred_check_branch
          %214 = sbr.rel (%p212) target = $region40
        $region39: #{tpu_custom_call.1} parent=31 // pred_region
          %215 = dma.done [#allocation6], 1536
        $region40: #{tpu_custom_call.1} parent=31 // pred_fallthru
          _
        %s216 = sand.u32 %s41, 1
        %s217 = scalar_lea.sflag [#allocation3], %s216
        %s218 = sand.u32 %s41, 1
        %s219 = smul.addr %s218, 24
        %s220 = scalar_lea.vmem [#allocation2], %s219
        %p221 = pneg %p54
        %p222 = pneg %p51
        %p223 = pneg %p80
        %p224 = pneg %p77
        %p225 = scmp.lt.s32.totalorder %s25, 0
        %s226 = scalar_select %p225, %s25, 0
        %s227 = scalar_lea.vmem %s2, %s226
        %p228 = pneg %p106
        %p229 = pneg %p103
        %p230 = pneg %p134
        %p231 = pneg %p131
        %s232 = sand.u32 %s121, 1
        %s233 = scalar_lea.sflag [#allocation4], %s232
        %s234 = sand.u32 %s121, 1
        %s235 = smul.addr %s234, 24
        %s236 = scalar_lea.vmem [#allocation7], %s235
        %s237 = smul.u32 3, %s26
        %p238 = scmp.lt.s32.totalorder %s25, 0
        %s239 = scalar_select %p238, %s25, 0
        %s240 = scalar_lea.vmem %s2, %s239
        %s241 = smul.u32 3, %s26
        %v243 = vld [vmem:[%s207] sm:$0xff]
        %v244 = vld [vmem:[%s207 + $0x8] sm:$0xff]
        %v245 = vld [vmem:[%s207 + $0x10] sm:$0xff]
        %v246 = vld [vmem:[#allocation5] sm:$0xf]
        %v247 = vld [vmem:[#allocation5 + $0x4] sm:$0xf]
        %v248 = vld [vmem:[#allocation5 + $0x8] sm:$0xf]
        %v249 = vld [vmem:[#allocation5 + $0xc] sm:$0xf]
        %v250 = vld [vmem:[#allocation5 + $0x10] sm:$0xf]
        %v251 = vld [vmem:[#allocation5 + $0x14] sm:$0xf]
        %v252 = vld [vmem:[#allocation5 + $0x18] sm:$0xf]
        %v253 = vld [vmem:[#allocation5 + $0x1c] sm:$0xf]
        %v254 = vld [vmem:[#allocation5 + $0x20] sm:$0xf]
        %v255 = vld [vmem:[#allocation5 + $0x24] sm:$0xf]
        %v256 = vld [vmem:[#allocation5 + $0x28] sm:$0xf]
        %v257 = vld [vmem:[#allocation5 + $0x2c] sm:$0xf]
        %v258 = vld [vmem:[#allocation5 + $0x30] sm:$0xf]
        %v259 = vld [vmem:[#allocation5 + $0x34] sm:$0xf]
        %v260 = vld [vmem:[#allocation5 + $0x38] sm:$0xf]
        %v261 = vld [vmem:[#allocation5 + $0x3c] sm:$0xf]
        %v262 = vld [vmem:[#allocation5 + $0x40] sm:$0xf]
        %v263 = vld [vmem:[#allocation5 + $0x44] sm:$0xf]
        %v264 = vld [vmem:[#allocation5 + $0x48] sm:$0xf]
        %v265 = vld [vmem:[#allocation5 + $0x4c] sm:$0xf]
        %v266 = vld [vmem:[#allocation5 + $0x50] sm:$0xf]
        %v267 = vld [vmem:[#allocation5 + $0x54] sm:$0xf]
        %v268 = vld [vmem:[#allocation5 + $0x58] sm:$0xf]
        %v269 = vld [vmem:[#allocation5 + $0x5c] sm:$0xf]
        %v270 = vld [vmem:[%s240] sm:$0x1]
        %v272 = vlaneseq
        %v273 = vshrl.u32 %v272, 7
        %v274 = vsub.s32 0, %v273
        %v275 = vrot.slane %v270, %v274
        %v280 = vunpack.c.l.b16 %v243
        %v281 = vunpack.c.h.b16 %v243
        %v282 = vunpack.c.l.b16 %v244
        %v283 = vunpack.c.h.b16 %v244
        %v284 = vunpack.c.l.b16 %v245
        %v285 = vunpack.c.h.b16 %v245
        %v286 = vpack.c.b16 %v282, %v280
        %v287 = vpack.c.b16 %v283, %v281
        %v288 = vpack.c.b16 %v284, %v284
        %v289 = vpack.c.b16 %v285, %v285
        %v316 = vunpack.c.l.b16 %v246
        %v317 = vunpack.c.l.b16 %v247
        %v318 = vunpack.c.l.b16 %v248
        %v319 = vunpack.c.l.b16 %v249
        %v320 = vunpack.c.l.b16 %v250
        %v321 = vunpack.c.l.b16 %v251
        %v322 = vunpack.c.l.b16 %v252
        %v323 = vunpack.c.l.b16 %v253
        %v324 = vunpack.c.l.b16 %v254
        %v325 = vunpack.c.l.b16 %v255
        %v326 = vunpack.c.l.b16 %v256
        %v327 = vunpack.c.l.b16 %v257
        %v328 = vunpack.c.l.b16 %v258
        %v329 = vunpack.c.l.b16 %v259
        %v330 = vunpack.c.l.b16 %v260
        %v331 = vunpack.c.l.b16 %v261
        %v332 = vunpack.c.l.b16 %v262
        %v333 = vunpack.c.l.b16 %v263
        %v334 = vunpack.c.l.b16 %v264
        %v335 = vunpack.c.l.b16 %v265
        %v336 = vunpack.c.l.b16 %v266
        %v337 = vunpack.c.l.b16 %v267
        %v338 = vunpack.c.l.b16 %v268
        %v339 = vunpack.c.l.b16 %v269
        %v340 = vpack.c.b16 %v317, %v316
        %v341 = vpack.c.b16 %v319, %v318
        %v342 = vpack.c.b16 %v321, %v320
        %v343 = vpack.c.b16 %v323, %v322
        %v344 = vpack.c.b16 %v325, %v324
        %v345 = vpack.c.b16 %v327, %v326
        %v346 = vpack.c.b16 %v329, %v328
        %v347 = vpack.c.b16 %v331, %v330
        %v348 = vpack.c.b16 %v333, %v332
        %v349 = vpack.c.b16 %v335, %v334
        %v350 = vpack.c.b16 %v337, %v336
        %v351 = vpack.c.b16 %v339, %v338
        %vm364 = vcmask 523264
        %v366 = vsel %vm364, %v287, 0
        %v369 = vsel %vm364, %v289, 0
        %371 = vmatprep.subr.bf16.mxu0 0
        %372 = vmatpush1.bf16.msra.mxu0 %v340
        %373 = vmatprep.subr.bf16.mxu0 0
        %374 = vmatpush1.bf16.msra.mxu0 %v341
        %375 = vmatprep.subr.bf16.mxu0 0
        %376 = vmatpush1.bf16.msra.mxu0 %v342
        %377 = vmatprep.subr.bf16.mxu0 0
        %378 = vmatpush1.bf16.msra.mxu0 %v343
        %379 = vmatprep.subr.bf16.mxu0 0
        %380 = vmatpush1.bf16.msra.mxu0 %v344
        %381 = vmatprep.subr.bf16.mxu0 0
        %382 = vmatpush1.bf16.msra.mxu0 %v345
        %383 = vmatprep.subr.bf16.mxu0 0
        %384 = vmatpush1.bf16.msra.mxu0 %v346
        %385 = vmatprep.subr.bf16.mxu0 0
        %386 = vmatpush1.bf16.msra.mxu0 %v347
        %387 = vmatprep.subr.bf16.mxu0 0
        %388 = vmatpush1.bf16.msra.mxu0 %v348
        %389 = vmatprep.subr.bf16.mxu0 0
        %390 = vmatpush1.bf16.msra.mxu0 %v349
        %391 = vmatprep.subr.bf16.mxu0 0
        %392 = vmatpush1.bf16.msra.mxu0 %v350
        %393 = vmatprep.subr.bf16.mxu0 0
        %394 = vmatpush1.bf16.msra.mxu0 %v351
        %395 = vmatprep.subr.bf16.mxu0 0
        %396 = vmatpush1.bf16.msra.mxu0 0
        %397 = vmatprep.subr.bf16.mxu0 0
        %398 = vmatpush1.bf16.msra.mxu0 0
        %399 = vmatprep.subr.bf16.mxu0 0
        %400 = vmatpush1.bf16.msra.mxu0 0
        %401 = vmatprep.subr.bf16.mxu0 0
        %402 = vmatpush1.bf16.msra.mxu0 0
        %403 = vmatprep.mubr.bf16.mxu0 %v366
        %404 = vmatmul.mubr.bf16.gmra.mrb[0].mxu0 %v286
        %v405 = vpop.f32.mrb[0].mxu0
        %v406 = vadd.f32 %v275, %v405
        %v407 = vpop.f32.mrb[0].mxu0
        %v408 = vpop.f32.mrb[0].mxu0
        %v409 = vadd.f32 %v275, %v408
        %v410 = vpop.f32.mrb[0].mxu0
        %411 = vmatprep.mubr.bf16.mxu0 %v369
        %412 = vmatmul.mubr.bf16.gmra.mrb[0].mxu0 %v288
        %v413 = vpop.f32.mrb[0].mxu0
        %v414 = vadd.f32 %v275, %v413
        %v415 = vpop.f32.mrb[0].mxu0
        %v416 = vpop.f32.mrb[0].mxu0
        %v417 = vpop.f32.mrb[0].mxu0
        %418 = vdwg.mxu0
        %419 = vst [vmem:[%s236] sm:$0xff] %v406
        %420 = vst [vmem:[%s236 + $0x8] sm:$0xff] %v409
        %421 = vst [vmem:[%s236 + $0x10] sm:$0xff] %v414
        %s422 = sand.u32 %s121, 1
        %s423 = scalar_lea.sflag [#allocation4], %s422
        %s424 = sand.u32 %s121, 1
        %s425 = smul.addr %s424, 24
        %s426 = scalar_lea.vmem [#allocation7], %s425
        // Predicated region
        $region41: #{tpu_custom_call.1} parent=31 // pred_check
          %p427 = pneg %p131
        $region42: #{tpu_custom_call.1} parent=31 // pred_check_branch
          %429 = sbr.rel (%p427) target = $region44
        $region43: #{tpu_custom_call.1} parent=31 // pred_region
          %s430 = smul.u32 3, %s26
          %s432 = ssub.s32 384, 384
          %433 = vsyncadd %s423, %s432
          %s434 = sadd.s32 %s25, %s430
          %s435 = smul.addr %s434, 128
          %s436 = scalar_lea.hbm %s3, %s435
          %s437 = sshll.u32 %s426, 4
          %s438 = int_to_ptr.vmem [resolvable:$true] %s437
          %443 = dma.vmem_to_hbm [thread:$0]  %s438, 384, %s436, %s423, 128, 128, 8
        $region44: #{tpu_custom_call.1} parent=31 // pred_fallthru
          _
      $region32: #{tpu_custom_call.1} parent=5 // pred_fallthru
        _
      %p444 = scmp.le.s32.totalorder 2, %s16
      // Predicated region
      $region45: #{tpu_custom_call.1} parent=5 // pred_check
        %p445 = pneg %p444
      $region46: #{tpu_custom_call.1} parent=5 // pred_check_branch
        %447 = sbr.rel (%p445) target = $region48
      $region47: #{tpu_custom_call.1} parent=5 // pred_region
        %s448 = ssub.s32 %s16, 2
        // Predicated region
        $region49: #{tpu_custom_call.1} parent=47 // pred_check
          %p449 = pneg %p137
        $region50: #{tpu_custom_call.1} parent=47 // pred_check_branch
          %451 = sbr.rel (%p449) target = $region52
        $region51: #{tpu_custom_call.1} parent=47 // pred_region
          %s452 = sand.u32 %s122, 1
          %s453 = scalar_lea.sflag [#allocation4], %s452
          %s454 = sand.u32 %s122, 1
          %s455 = smul.addr %s454, 24
          %s456 = scalar_lea.vmem [#allocation7], %s455
          %457 = dma.done %s453, 384
        $region52: #{tpu_custom_call.1} parent=47 // pred_fallthru
          _
      $region48: #{tpu_custom_call.1} parent=5 // pred_fallthru
        _
    $region6: #{tpu_custom_call.1} parent=1 // loop_footer
      %s20 = sadd.s32 1, %s16
    $region7: #{tpu_custom_call.1} parent=1 // loop_footer_branch
      %15 = sbr.rel target = $region3
    $region8: #{tpu_custom_call.1} parent=1 // loop_exit
      _
    %458 = vsyncpa [#allocation3], 1
    %s459 = scalar_lea.sflag [#allocation3], 1
    %460 = vsyncpa %s459, 1
    %461 = vsyncpa [#allocation6], 1
    %462 = vsyncpa [#allocation4], 1
    %s463 = scalar_lea.sflag [#allocation4], 1
    %464 = vsyncpa %s463, 1

</llo_original>
